<compile_context>
chip_gen: v6e
topology: v6e:2x2x1
jax: 0.10.0
libtpu: 0.0.40
codegen_flags: <defaults>
</compile_context>

<pallas_src>
import jax
import jax.numpy as jnp
from jax.experimental import pallas as pl
from jax.experimental.pallas import tpu as pltpu


_M_CAP = 512    # output-tile rows (multiple of 8)
_N_CAP = 1024   # output-tile cols (lane-dense, multiple of 128)
_K_CAP = 1024   # contraction tile (multiple of 128)


def _round_up(x, m):
    return (x + m - 1) // m * m


def _plan_dim(size, align, cap):
    """Pick (tile, padded_size) with tile % align == 0 and padded_size % tile == 0.

    Pads only to `align` when the whole dim fits in one tile (<= cap); otherwise
    picks the largest tile <= cap whose extra padding is <= 12.5% of the work.
    `tile = align` is a zero-waste fallback (padded_min is already a multiple of it).
    """
    padded_min = _round_up(size, align)
    if padded_min <= cap:
        return padded_min, padded_min
    t = (cap // align) * align
    while t > align:
        padded = _round_up(padded_min, t)
        if (padded - padded_min) * 8 <= padded_min:
            return t, padded
        t -= align
    return align, padded_min


def _transmat_kernel(x_ref, w_ref, o_ref, acc_ref):
    # x_ref: (tm, tk), w_ref: (tk, tn) -- weight already transposed to [K, N] at prep
    # time, so this is a plain MXU matmul (no trans-B, no per-step XLU transpose).
    @pl.when(pl.program_id(2) == 0)
    def _init():
        acc_ref[...] = jnp.zeros_like(acc_ref)

    acc_ref[...] += jnp.dot(
        x_ref[...], w_ref[...], preferred_element_type=jnp.float32
    )

    @pl.when(pl.program_id(2) == pl.num_programs(2) - 1)
    def _store():
        o_ref[...] = acc_ref[...].astype(o_ref.dtype)


def _matmul_padded(x_p, w_p, out_dtype, tm, tn, tk):
    """x_p: [B_p, K_p], w_p: [K_p, N_p] (both padded, same compute dtype)."""
    B_p, K_p = x_p.shape
    K_p_w, N_p = w_p.shape
    assert K_p == K_p_w
    grid = (B_p // tm, N_p // tn, K_p // tk)

    x_bytes = B_p * K_p * x_p.dtype.itemsize
    w_bytes = K_p * N_p * w_p.dtype.itemsize
    out_bytes = B_p * N_p * jnp.dtype(out_dtype).itemsize
    # Real traffic: x is re-streamed once per N block, w once per M block.
    cost = pl.CostEstimate(
        flops=2 * B_p * N_p * K_p,
        transcendentals=0,
        bytes_accessed=x_bytes * (N_p // tn) + w_bytes * (B_p // tm) + out_bytes,
    )

    return pl.pallas_call(
        _transmat_kernel,
        out_shape=jax.ShapeDtypeStruct((B_p, N_p), out_dtype),
        grid_spec=pltpu.PrefetchScalarGridSpec(
            num_scalar_prefetch=0,
            grid=grid,
            in_specs=[
                pl.BlockSpec((tm, tk), lambda i, j, k: (i, k)),   # activations
                pl.BlockSpec((tk, tn), lambda i, j, k: (k, j)),   # weight [K, N]
            ],
            out_specs=pl.BlockSpec((tm, tn), lambda i, j, k: (i, j)),
            scratch_shapes=[pltpu.VMEM((tm, tn), jnp.float32)],
        ),
        compiler_params=pltpu.CompilerParams(
            dimension_semantics=("parallel", "parallel", "arbitrary"),
            allow_input_fusion=[True, True],
            vmem_limit_bytes=32 * 1024 * 1024,
        ),
        cost_estimate=cost,
    )(x_p, w_p)


def prepare_weight(w_src2trg, compute_dtype=jnp.bfloat16):
    """One-time weight prep (off the hot path): cast -> transpose to [K, N] -> pad.

    w_src2trg is in PyTorch nn.Linear layout [dim_trg, dim_src].
    """
    dim_trg, dim_src = w_src2trg.shape
    tn, N_p = _plan_dim(dim_trg, 128, _N_CAP)
    tk, K_p = _plan_dim(dim_src, 128, _K_CAP)
    w = jnp.transpose(w_src2trg.astype(compute_dtype))            # [dim_src, dim_trg]
    if (K_p, N_p) != (dim_src, dim_trg):
        w = jnp.pad(w, ((0, K_p - dim_src), (0, N_p - dim_trg)))
    return w, (dim_src, dim_trg, tk, tn)


def transmat_apply(src, prepared, *, compute_dtype=jnp.bfloat16, out_dtype=None):
    """src @ W_src2trg.T using a prepared weight (see prepare_weight)."""
    w_p, (dim_src, dim_trg, tk, tn) = prepared
    out_dtype = src.dtype if out_dtype is None else out_dtype
    *lead, ds = src.shape
    assert ds == dim_src, f"expected last dim {dim_src}, got {ds}"
    K_p, N_p = w_p.shape

    x = src.reshape(-1, dim_src).astype(compute_dtype)
    B = x.shape[0]
    tm, B_p = _plan_dim(B, 8, _M_CAP)

    # Keep >= 2 output blocks when possible so both v7x TensorCores get work.
    if B_p // tm == 1 and N_p // tn == 1 and N_p % 256 == 0:
        tn = N_p // 2

    if (B_p, K_p) != (B, dim_src):
        # K must be zero-padded (stale data would be accumulated); M pad is sliced off.
        x = jnp.pad(x, ((0, B_p - B), (0, K_p - dim_src)))

    out = _matmul_padded(x, w_p, out_dtype, tm, tn, tk)
    out = out[:B, :dim_trg]
    return out.reshape(*lead, dim_trg)


class TransMat:
    """JAX/Pallas port of the PyTorch TransMat forward pass (src2trg Linear, no bias).

    Weights are prepared once at construction, keeping the per-call hot path free of
    cast / transpose / pad passes over the weight.
    """

    def __init__(self, w_src2trg, w_trg2src=None, *, compute_dtype=jnp.bfloat16):
        self.compute_dtype = compute_dtype
        self.dim_trg, self.dim_src = w_src2trg.shape
        self._prep_s2t = prepare_weight(w_src2trg, compute_dtype)
        # trg2src weight exists in the PyTorch module but forward() never uses it.
        self._prep_t2s = (
            None if w_trg2src is None else prepare_weight(w_trg2src, compute_dtype)
        )

    def forward(self, src):
        return transmat_apply(src, self._prep_s2t, compute_dtype=self.compute_dtype)

    __call__ = forward
    forward_src2trg = forward

    def forward_trg2src(self, trg):
        if self._prep_t2s is None:
            raise ValueError("trg2src weight was not provided")
        return transmat_apply(trg, self._prep_t2s, compute_dtype=self.compute_dtype)

    # TODO(synk): eval_lexicon / bootstrap are host-side loss/lexicon-search loops
    # (optimizer + sorting); they are not kernel work and are left to plain JAX.


def transmat_forward(src, w_src2trg, *, compute_dtype=jnp.bfloat16, out_dtype=None):
    """One-shot functional path (weight prep per call; allow_input_fusion lets XLA
    fuse the cast/transpose/pad into the pallas_call operand). For repeated calls,
    prefer the TransMat class."""
    return transmat_apply(
        src,
        prepare_weight(w_src2trg, compute_dtype),
        compute_dtype=compute_dtype,
        out_dtype=out_dtype,
    )


if __name__ == "__main__":
    key = jax.random.PRNGKey(0)
    k_x, k_w, k_x2, k_w2 = jax.random.split(key, 4)

    # --- small case consistent with the module (dim_emb_trg defaults to dim_emb_src) ---
    batch, dim_emb_src, dim_emb_trg = 8, 32, 32
    bound = 1.0 / jnp.sqrt(jnp.float32(dim_emb_src))
    w_src2trg = jax.random.uniform(
        k_w, (dim_emb_trg, dim_emb_src), jnp.float32, minval=-bound, maxval=bound
    )
    src = jax.random.normal(k_x, (batch, dim_emb_src), jnp.float32)

    model = TransMat(w_src2trg)                       # weight prepped once at init
    out = jax.block_until_ready(model(src))
    ref = (
        src.astype(jnp.bfloat16).astype(jnp.float32)
        @ w_src2trg.astype(jnp.bfloat16).astype(jnp.float32).T
    )
    assert out.shape == (batch, dim_emb_trg)
    assert jnp.allclose(out, ref, atol=2e-3, rtol=2e-3)

    # --- f32 escape hatch (MXU f32 path; loose tol for accumulation-order/precision) ---
    model_f32 = TransMat(w_src2trg, compute_dtype=jnp.float32)
    out_f32 = jax.block_until_ready(model_f32(src))
    ref_f32 = src @ w_src2trg.T
    assert jnp.allclose(out_f32, ref_f32, atol=1e-2, rtol=1e-2)

    # --- non-aligned case exercising minimal-alignment padding (B pads 260->264,
    #     not to the tile size) and the functional one-shot path ---
    B2, ds2, dt2 = 260, 160, 200
    w2 = jax.random.uniform(k_w2, (dt2, ds2), jnp.float32, minval=-0.1, maxval=0.1)
    x2 = jax.random.normal(k_x2, (B2, ds2), jnp.float32)
    out2 = jax.block_until_ready(transmat_forward(x2, w2))
    ref2 = (
        x2.astype(jnp.bfloat16).astype(jnp.float32)
        @ w2.astype(jnp.bfloat16).astype(jnp.float32).T
    )
    assert out2.shape == (B2, dt2)
    assert jnp.allclose(out2, ref2, atol=5e-3, rtol=5e-3)

    print("KERNEL_OK")
</pallas_src>

<mosaic_0001>
module attributes {stable_mosaic.version = 11 : i64} {
  func.func @_transmat_kernel(%arg0: i32, %arg1: i32, %arg2: i32, %arg3: memref<8x128xbf16, #tpu.memory_space<vmem>>, %arg4: memref<128x128xbf16, #tpu.memory_space<vmem>>, %arg5: memref<8x128xf32, #tpu.memory_space<vmem>>, %arg6: memref<8x128xf32, #tpu.memory_space<vmem>>) attributes {dimension_semantics = [#tpu.dimension_semantics<parallel>, #tpu.dimension_semantics<parallel>, #tpu.dimension_semantics<arbitrary>], iteration_bounds = array<i64: 1, 1, 1>, scalar_prefetch = 0 : i64, scratch_operands = 1 : i64, tpu.core_type = #tpu.core_type<tc>, window_params = [{transform_indices = @transform_0, window_bounds = array<i64: 8, 128>}, {transform_indices = @transform_1, window_bounds = array<i64: 128, 128>}, {transform_indices = @transform_2, window_bounds = array<i64: 8, 128>}]} {
    %c0_i32 = arith.constant 0 : i32
    %0 = arith.cmpi eq, %arg2, %c0_i32 : i32
    %1 = arith.extui %0 : i1 to i32
    %c0_i32_0 = arith.constant 0 : i32
    %2 = arith.cmpi ne, %1, %c0_i32_0 : i32
    scf.if %2 {
      %cst_10 = arith.constant 0.000000e+00 : f32
      %12 = vector.broadcast %cst_10 : f32 to vector<8x128xf32>
      %c0_11 = arith.constant 0 : index
      %c0_12 = arith.constant 0 : index
      %13 = vector.load %arg6[%c0_11, %c0_12] : memref<8x128xf32, #tpu.memory_space<vmem>>, vector<8x128xf32>
      tpu.vector_store %arg6[%c0_11, %c0_12], %12 {strides = array<i32>} : memref<8x128xf32, #tpu.memory_space<vmem>>, vector<8x128xf32>,
    } else {
    }
    %c0 = arith.constant 0 : index
    %c0_1 = arith.constant 0 : index
    %3 = vector.load %arg6[%c0, %c0_1] : memref<8x128xf32, #tpu.memory_space<vmem>>, vector<8x128xf32>
    %c0_2 = arith.constant 0 : index
    %c0_3 = arith.constant 0 : index
    %4 = vector.load %arg3[%c0_2, %c0_3] : memref<8x128xbf16, #tpu.memory_space<vmem>>, vector<8x128xbf16>
    %c0_4 = arith.constant 0 : index
    %c0_5 = arith.constant 0 : index
    %5 = vector.load %arg4[%c0_4, %c0_5] : memref<128x128xbf16, #tpu.memory_space<vmem>>, vector<128x128xbf16>
    %cst = arith.constant dense<0.000000e+00> : vector<8x128xf32>
    %6 = tpu.matmul %4, %5, %cst {dimension_numbers = #tpu.dot_dimension_numbers<[1], [0], [0], [1], [0, 0, 1, 1], [], []>} : vector<8x128xbf16>, vector<128x128xbf16>, vector<8x128xf32> -> vector<8x128xf32>
    %7 = arith.addf %3, %6 : vector<8x128xf32>
    %c0_6 = arith.constant 0 : index
    %c0_7 = arith.constant 0 : index
    %8 = vector.load %arg6[%c0_6, %c0_7] : memref<8x128xf32, #tpu.memory_space<vmem>>, vector<8x128xf32>
    tpu.vector_store %arg6[%c0_6, %c0_7], %7 {strides = array<i32>} : memref<8x128xf32, #tpu.memory_space<vmem>>, vector<8x128xf32>,
    %c0_i32_8 = arith.constant 0 : i32
    %9 = arith.cmpi eq, %arg2, %c0_i32_8 : i32
    %10 = arith.extui %9 : i1 to i32
    %c0_i32_9 = arith.constant 0 : i32
    %11 = arith.cmpi ne, %10, %c0_i32_9 : i32
    scf.if %11 {
      %c0_10 = arith.constant 0 : index
      %c0_11 = arith.constant 0 : index
      %12 = vector.load %arg6[%c0_10, %c0_11] : memref<8x128xf32, #tpu.memory_space<vmem>>, vector<8x128xf32>
      %c0_12 = arith.constant 0 : index
      %c0_13 = arith.constant 0 : index
      %13 = vector.load %arg5[%c0_12, %c0_13] : memref<8x128xf32, #tpu.memory_space<vmem>>, vector<8x128xf32>
      tpu.vector_store %arg5[%c0_12, %c0_13], %12 {strides = array<i32>} : memref<8x128xf32, #tpu.memory_space<vmem>>, vector<8x128xf32>,
    } else {
    }
    return
  }
  func.func @transform_0(%arg0: i32, %arg1: i32, %arg2: i32) -> (i32, i32) {
    %c0_i32 = arith.constant 0 : i32
    return %arg0, %arg2 : i32, i32
  }
  func.func @transform_1(%arg0: i32, %arg1: i32, %arg2: i32) -> (i32, i32) {
    %c0_i32 = arith.constant 0 : i32
    return %arg2, %arg1 : i32, i32
  }
  func.func @transform_2(%arg0: i32, %arg1: i32, %arg2: i32) -> (i32, i32) {
    %c0_i32 = arith.constant 0 : i32
    return %arg0, %arg1 : i32, i32
  }
}

</mosaic_0001>

<llo_original>
// kernel: tpu_custom_call.1
$region0: #{tpu_custom_call.1}
  #allocation0 [shape = 'u32[]', space=smem, size = 0x4, offset = 0x4, fixed_abs, tag = 'smem constant byte address 0x4 - core index']
  #allocation1 [shape = 'u32[144,128]{1,0:T(1,128)}', space=vmem, size = 0x12000, scoped, tag = 'internal scratch']
  #allocation2 [shape = 'f32[8,128]{1,0:T(8,128)}', space=vmem, size = 0x1000, scoped, tag = 'scratch operand']
  %s0 = inlined_call_operand.hbm [shape: bf16[8,128], index: 0, kind: input, shape index: {}]
  %s1 = inlined_call_operand.hbm [shape: bf16[128,128], index: 1, kind: input, shape index: {}]
  %s2 = inlined_call_operand.hbm [shape: f32[8,128], index: 2, kind: output, shape index: {}]
  %s3 = sld [smem:[#allocation0]]
  $region34: #{tpu_custom_call.1} parent=0
    _
  %s5 = ssub.s32 1, %s3
  %s6 = scalar_select 0, %s5, %s3
  $region1: #{tpu_custom_call.1} parent=0
    #allocation3 [shape = 'u8[2048]{0}', space=vmem, size = 0x800, scoped, tag = 'input window, operand 0, single buffered']
    #allocation4 [shape = 's32[1]{0}', space=sflag, size = 0x4, scoped, tag = 'scoped memory for tpu_custom_call.1']
    #allocation5 [shape = 's32[1]{0}', space=sflag, size = 0x4, scoped, tag = 'scoped memory for tpu_custom_call.1']
    #allocation6 [shape = 'u8[32768]{0}', space=vmem, size = 0x8000, scoped, tag = 'input window, operand 1, single buffered']
    #allocation7 [shape = 's32[1]{0}', space=sflag, size = 0x4, scoped, tag = 'scoped memory for tpu_custom_call.1']
    #allocation8 [shape = 'u8[4096]{0}', space=vmem, size = 0x1000, scoped, tag = 'output window, operand 0, single buffered']
    %7 = vsyncpa [#allocation4], 0
    %8 = vsyncpa [#allocation7], 0
    %9 = vsyncpa [#allocation5], 0
    // Predicated region
    $region2: #{tpu_custom_call.1} parent=1 // pred_check
      _
    $region3: #{tpu_custom_call.1} parent=1 // pred_check_branch
      %11 = sbr.rel (0) target = $region5
    $region4: #{tpu_custom_call.1} parent=1 // pred_region
      %s13 = ssub.s32 64, 64
      %14 = vsyncadd [#allocation4], %s13
      %s16 = sshll.u32 [#allocation3], 4
      %s17 = int_to_ptr.vmem [resolvable:$true] %s16
      %19 = dma.hbm_to_vmem [thread:$0]  %s0, 64, %s17, [#allocation4]
    $region5: #{tpu_custom_call.1} parent=1 // pred_fallthru
      _
    // Predicated region
    $region6: #{tpu_custom_call.1} parent=1 // pred_check
      _
    $region7: #{tpu_custom_call.1} parent=1 // pred_check_branch
      %21 = sbr.rel (0) target = $region9
    $region8: #{tpu_custom_call.1} parent=1 // pred_region
      %s23 = ssub.s32 1024, 1024
      %24 = vsyncadd [#allocation7], %s23
      %s25 = sshll.u32 [#allocation6], 4
      %s26 = int_to_ptr.vmem [resolvable:$true] %s25
      %31 = dma.hbm_to_vmem [thread:$0]  %s1, 1024, %s26, [#allocation7], 64, 64, 4
    $region9: #{tpu_custom_call.1} parent=1 // pred_fallthru
      _
    // Predicated region
    $region10: #{tpu_custom_call.1} parent=1 // pred_check
      _
    $region11: #{tpu_custom_call.1} parent=1 // pred_check_branch
      %33 = sbr.rel (0) target = $region13
    $region12: #{tpu_custom_call.1} parent=1 // pred_region
      %34 = dma.done [#allocation4], 64
    $region13: #{tpu_custom_call.1} parent=1 // pred_fallthru
      _
    // Predicated region
    $region14: #{tpu_custom_call.1} parent=1 // pred_check
      _
    $region15: #{tpu_custom_call.1} parent=1 // pred_check_branch
      %36 = sbr.rel (0) target = $region17
    $region16: #{tpu_custom_call.1} parent=1 // pred_region
      %37 = dma.done [#allocation7], 1024
    $region17: #{tpu_custom_call.1} parent=1 // pred_fallthru
      _
    %p39 = scmp.eq.s32.totalorder 0, 0
    // Predicated region
    $region18: #{tpu_custom_call.1} parent=1 // pred_check
      %p40 = pneg %p39
    $region19: #{tpu_custom_call.1} parent=1 // pred_check_branch
      %42 = sbr.rel (%p40) target = $region21
    $region20: #{tpu_custom_call.1} parent=1 // pred_region
      %43 = vst [vmem:[#allocation2] sm:$0xff] 0.0
    $region21: #{tpu_custom_call.1} parent=1 // pred_fallthru
      _
    %v44 = vld [vmem:[#allocation2] sm:$0xff]
    %v45 = vld [vmem:[#allocation3] sm:$0xf]
    %v46 = vld [vmem:[#allocation6] sm:$0xf]
    %v47 = vld [vmem:[#allocation6 + $0x4] sm:$0xf]
    %v48 = vld [vmem:[#allocation6 + $0x8] sm:$0xf]
    %v49 = vld [vmem:[#allocation6 + $0xc] sm:$0xf]
    %v50 = vld [vmem:[#allocation6 + $0x10] sm:$0xf]
    %v51 = vld [vmem:[#allocation6 + $0x14] sm:$0xf]
    %v52 = vld [vmem:[#allocation6 + $0x18] sm:$0xf]
    %v53 = vld [vmem:[#allocation6 + $0x1c] sm:$0xf]
    %v54 = vld [vmem:[#allocation6 + $0x20] sm:$0xf]
    %v55 = vld [vmem:[#allocation6 + $0x24] sm:$0xf]
    %v56 = vld [vmem:[#allocation6 + $0x28] sm:$0xf]
    %v57 = vld [vmem:[#allocation6 + $0x2c] sm:$0xf]
    %v58 = vld [vmem:[#allocation6 + $0x30] sm:$0xf]
    %v59 = vld [vmem:[#allocation6 + $0x34] sm:$0xf]
    %v60 = vld [vmem:[#allocation6 + $0x38] sm:$0xf]
    %v61 = vld [vmem:[#allocation6 + $0x3c] sm:$0xf]
    %v78 = vunpack.c.l.b16 %v46
    %v79 = vunpack.c.l.b16 %v47
    %v80 = vunpack.c.l.b16 %v48
    %v81 = vunpack.c.l.b16 %v49
    %v82 = vunpack.c.l.b16 %v50
    %v83 = vunpack.c.l.b16 %v51
    %v84 = vunpack.c.l.b16 %v52
    %v85 = vunpack.c.l.b16 %v53
    %v86 = vunpack.c.l.b16 %v54
    %v87 = vunpack.c.l.b16 %v55
    %v88 = vunpack.c.l.b16 %v56
    %v89 = vunpack.c.l.b16 %v57
    %v90 = vunpack.c.l.b16 %v58
    %v91 = vunpack.c.l.b16 %v59
    %v92 = vunpack.c.l.b16 %v60
    %v93 = vunpack.c.l.b16 %v61
    %v94 = vpack.c.b16 %v79, %v78
    %v95 = vpack.c.b16 %v81, %v80
    %v96 = vpack.c.b16 %v83, %v82
    %v97 = vpack.c.b16 %v85, %v84
    %v98 = vpack.c.b16 %v87, %v86
    %v99 = vpack.c.b16 %v89, %v88
    %v100 = vpack.c.b16 %v91, %v90
    %v101 = vpack.c.b16 %v93, %v92
    %110 = vmatprep.subr.bf16.mxu0 0
    %111 = vmatpush1.bf16.msra.mxu0 %v101
    %112 = vmatprep.subr.bf16.mxu0 0
    %113 = vmatpush1.bf16.msra.mxu0 %v100
    %114 = vmatprep.subr.bf16.mxu0 0
    %115 = vmatpush1.bf16.msra.mxu0 %v99
    %116 = vmatprep.subr.bf16.mxu0 0
    %117 = vmatpush1.bf16.msra.mxu0 %v98
    %118 = vmatprep.subr.bf16.mxu0 0
    %119 = vmatpush1.bf16.msra.mxu0 %v97
    %120 = vmatprep.subr.bf16.mxu0 0
    %121 = vmatpush1.bf16.msra.mxu0 %v96
    %122 = vmatprep.subr.bf16.mxu0 0
    %123 = vmatpush1.bf16.msra.mxu0 %v95
    %124 = vmatprep.subr.bf16.mxu0 0
    %125 = vmatpush1.bf16.msra.mxu0 %v94
    %126 = vmatprep.subr.bf16.mxu0 0
    %127 = vmatpush2.bf16.msra.mxu0 0
    %128 = vmatprep.subr.bf16.mxu0 0
    %129 = vmatpush2.bf16.msra.mxu0 0
    %130 = vmatprep.subr.bf16.mxu0 0
    %131 = vmatpush2.bf16.msra.mxu0 0
    %132 = vmatprep.subr.bf16.mxu0 0
    %133 = vmatpush2.bf16.msra.mxu0 0
    %134 = vmatprep.subr.bf16.mxu0 0
    %135 = vmatpush2.bf16.msra.mxu0 0
    %136 = vmatprep.subr.bf16.mxu0 0
    %137 = vmatpush2.bf16.msra.mxu0 0
    %138 = vmatprep.subr.bf16.mxu0 0
    %139 = vmatpush2.bf16.msra.mxu0 0
    %140 = vmatprep.subr.bf16.mxu0 0
    %141 = vmatpush2.bf16.msra.mxu0 0
    %142 = vmatprep.mubr.bf16.mxu0 0
    %143 = vmatmul.mubr.bf16.gmra.mxu0 %v45
    %v144 = vpop.f32.mrf.mxu0
    %v145 = vadd.f32 0.0, %v144
    %v146 = vpop.f32.mrf.mxu0
    %v147 = vpop.f32.mrf.mxu0
    %v148 = vpop.f32.mrf.mxu0
    %149 = vdwg.mxu0
    %v150 = vadd.f32 %v44, %v145
    %151 = vst [vmem:[#allocation2] sm:$0xff] %v150
    // Predicated region
    $region22: #{tpu_custom_call.1} parent=1 // pred_check
      %p152 = pneg %p39
    $region23: #{tpu_custom_call.1} parent=1 // pred_check_branch
      %154 = sbr.rel (%p152) target = $region25
    $region24: #{tpu_custom_call.1} parent=1 // pred_region
      %v155 = vld [vmem:[#allocation2] sm:$0xff]
      %156 = vst [vmem:[#allocation8] sm:$0xff] %v155
    $region25: #{tpu_custom_call.1} parent=1 // pred_fallthru
      _
    // Predicated region
    $region26: #{tpu_custom_call.1} parent=1 // pred_check
      _
    $region27: #{tpu_custom_call.1} parent=1 // pred_check_branch
      %158 = sbr.rel (0) target = $region29
    $region28: #{tpu_custom_call.1} parent=1 // pred_region
      %s160 = ssub.s32 128, 128
      %161 = vsyncadd [#allocation5], %s160
      %s163 = sshll.u32 [#allocation8], 4
      %s164 = int_to_ptr.vmem [resolvable:$true] %s163
      %166 = dma.vmem_to_hbm [thread:$0]  %s164, 128, %s2, [#allocation5]
    $region29: #{tpu_custom_call.1} parent=1 // pred_fallthru
      _
    // Predicated region
    $region30: #{tpu_custom_call.1} parent=1 // pred_check
      _
    $region31: #{tpu_custom_call.1} parent=1 // pred_check_branch
      %168 = sbr.rel (0) target = $region33
    $region32: #{tpu_custom_call.1} parent=1 // pred_region
      %169 = dma.done [#allocation5], 128
    $region33: #{tpu_custom_call.1} parent=1 // pred_fallthru
      _
    %170 = vsyncpa [#allocation4], 1
    %171 = vsyncpa [#allocation7], 1
    %172 = vsyncpa [#allocation5], 1

</llo_original>
